<compile_context>
chip_gen: v7x
topology: tpu7x:2x2x1
jax: 0.10.0
libtpu: 0.0.40
codegen_flags: <defaults>
</compile_context>

<pallas_src>
import jax
import jax.numpy as jnp
from jax import lax
from jax.experimental import pallas as pl
from jax.experimental.pallas import tpu as pltpu

IGNORE_INDEX = 515


# --------------------------------------------------------------------------- #
# helpers
# --------------------------------------------------------------------------- #
def _tpu_vmem_bytes():
    """Physical VMEM of the current chip (64 MiB on v7x, 128 MiB on v5e/v6e)."""
    try:
        info = pltpu.get_tpu_info()
        return int(getattr(info, "vmem_capacity_bytes", 64 * 1024 * 1024))
    except Exception:
        return 64 * 1024 * 1024


def _pick_tile(dim, quantum, max_tile):
    """Largest legal tile: `dim` itself if it fits, else the biggest divisor of
    `dim` that is a multiple of `quantum` and <= max_tile (falls back to dim)."""
    if dim <= max_tile:
        return dim
    start = max_tile - (max_tile % quantum)
    for t in range(start, 0, -quantum):
        if dim % t == 0:
            return t
    return dim


def _flatten_image(x):
    """(B, C, H, W) -> lane-dense (B, CHW/128, 128) slab (metadata-only reshape)."""
    b = x.shape[0]
    n = 1
    for d in x.shape[1:]:
        n *= d
    if n % 128 == 0:
        return x.reshape(b, n // 128, 128)
    # TODO(synk): CHW not a multiple of 128 falls back to a masked (1, n) layout.
    return x.reshape(b, 1, n)


# --------------------------------------------------------------------------- #
# kernel
# --------------------------------------------------------------------------- #
def joint_loss_kernel(length_ref,                      # SMEM (B,) int32 (scalar prefetch)
                      logits_ref, labels_ref,          # VMEM (1,Tr,Tv) / (1,Tr,1)
                      fimg_ref, img_ref,               # VMEM (1,S,Wl) lane-dense image slabs
                      g_attn_ref, r_attn_ref,          # VMEM (1,Hd,Tq,Tk) / (1,Hd,Tk,Tq)
                      out_ref,                         # VMEM (1,1,128) per-sample partials
                      m_scr, l_scr, corr_scr):         # VMEM (Tr,1) f32 online-LSE scratch
    b = pl.program_id(0)
    k = pl.program_id(1)
    v = pl.program_id(2)
    nk = pl.num_programs(1)
    nv = pl.num_programs(2)

    tr = logits_ref.shape[1]
    tv = logits_ref.shape[2]

    length_f = length_ref[b].astype(jnp.float32)
    lane = lax.broadcasted_iota(jnp.int32, (1, 128), 1)

    is_first = jnp.logical_and(k == 0, v == 0)
    is_v_last = v == nv - 1
    is_last = jnp.logical_and(k == nk - 1, is_v_last)

    # ---- first step of each sample: image MSE + masked joint-attention MSE ----
    @pl.when(is_first)
    def _():
        # loss_G : MSE(fake_image, image) averaged over (C,H,W)
        fi = fimg_ref[0].astype(jnp.float32)
        im = img_ref[0].astype(jnp.float32)
        d = fi - im
        n_img = float(d.shape[0] * d.shape[1])
        g_val = jnp.sum(d * d) * (1.0 / n_img)

        # loss_J : ||g_attn - r_attn^T||^2 * mask(k) / mask.sum(), transpose-free:
        #   sum((g - r^T)^2 m) = sum(g^2 m) + sum(r^2 m) - 2 * sum_h tr((g*m) @ r)
        g_a = g_attn_ref[0].astype(jnp.float32)        # (Hd, Tq, Tk)
        r_a = r_attn_ref[0].astype(jnp.float32)        # (Hd, Tk, Tq)
        hd, tq, tk = g_a.shape
        mk_g = (lax.broadcasted_iota(jnp.int32, g_a.shape, 2).astype(jnp.float32)
                < length_f).astype(jnp.float32)
        mk_r = (lax.broadcasted_iota(jnp.int32, r_a.shape, 1).astype(jnp.float32)
                < length_f).astype(jnp.float32)
        gm = g_a * mk_g
        term_g = jnp.sum(gm * g_a)
        term_r = jnp.sum(r_a * r_a * mk_r)
        cross = lax.dot_general(gm, r_a,
                                dimension_numbers=(((2,), (1,)), ((0,), (0,))),
                                preferred_element_type=jnp.float32)   # (Hd,Tq,Tq)
        qi = lax.broadcasted_iota(jnp.int32, cross.shape, 1)
        pi = lax.broadcasted_iota(jnp.int32, cross.shape, 2)
        diag = jnp.sum(jnp.where(qi == pi, cross, 0.0))
        mask_sum = float(hd * tq) * jnp.minimum(length_f, float(tk))
        # TODO(synk): mask_sum == 0 when length == 0 (same div-by-zero hazard as
        #             the PyTorch reference); clamp here if that can ever happen.
        j_val = (term_g + term_r - 2.0 * diag) / mask_sum

        out_ref[0] = (jnp.where(lane == 1, g_val, 0.0)
                      + jnp.where(lane == 2, j_val, 0.0))

    # ---- online logsumexp over vocab tiles (cross-entropy, ignore_index=515) --
    @pl.when(v == 0)
    def _():
        m_scr[...] = jnp.full(m_scr.shape, -jnp.inf, jnp.float32)
        l_scr[...] = jnp.zeros(l_scr.shape, jnp.float32)
        corr_scr[...] = jnp.zeros(corr_scr.shape, jnp.float32)

    x = logits_ref[0].astype(jnp.float32)              # (Tr, Tv)
    lbl = labels_ref[0]                                # (Tr, 1) int32
    v_iota = lax.broadcasted_iota(jnp.int32, (tr, tv), 1) + v * tv

    m_prev = m_scr[...]
    m_new = jnp.maximum(m_prev, jnp.max(x, axis=-1, keepdims=True))
    exp_x = jnp.exp(x - m_new)
    l_scr[...] = (l_scr[...] * jnp.exp(m_prev - m_new)
                  + jnp.sum(exp_x, axis=-1, keepdims=True))
    m_scr[...] = m_new
    corr_scr[...] = corr_scr[...] + jnp.sum(
        jnp.where(v_iota == lbl, x, 0.0), axis=-1, keepdims=True)

    # ---- finalize CE for this row tile; accumulate into lane 0 of the output --
    @pl.when(is_v_last)
    def _():
        ce = m_scr[...] + jnp.log(l_scr[...]) - corr_scr[...]
        # NOTE: keep the ignore-mask AFTER the correct-logit extraction (handles
        # both V <= 515 and V > 515, matching CrossEntropyLoss(ignore_index=515)).
        ce = jnp.where(lbl == IGNORE_INDEX, 0.0, ce)
        out_ref[0] = out_ref[0] + jnp.where(lane == 0, jnp.sum(ce), 0.0)

    # ---- very last step of the sample: divide the CE sum by `length` ----------
    @pl.when(is_last)
    def _():
        out_ref[0] = out_ref[0] * jnp.where(lane == 0, 1.0 / length_f, 1.0)


# --------------------------------------------------------------------------- #
# wrapper
# --------------------------------------------------------------------------- #
def joint_loss_forward(preds, image, label, length, real_or_fake, is_joint=True):
    """JAX wrapper mirroring joint_loss.forward for the R / G / J losses."""
    B = image.shape[0]
    prediction = preds['prediction']                   # (B*T, V) native dtype
    fake_image = preds['fake_image']                   # (B, C, H, W)
    g_attn = preds['G_attns'][-1]                      # (B, Hd, Tq, Tk)
    r_attn = preds['R_attns'][-1]                      # (B, Hd, Tk, Tq) -- NOT pre-transposed

    T = label.shape[1] if label.ndim > 1 else label.shape[0] // B
    V = prediction.shape[-1]
    Hd, Tq, Tk = g_attn.shape[1], g_attn.shape[2], g_attn.shape[3]

    logits = prediction.reshape(B, T, V)               # metadata-only reshape, native dtype
    labels = label.reshape(B, T, 1).astype(jnp.int32)
    length_i = length.reshape(B).astype(jnp.int32)     # SMEM scalar-prefetch operand
    img2 = _flatten_image(image)                       # (B, S, Wl) lane-dense slab
    fimg2 = _flatten_image(fake_image)
    S, Wl = img2.shape[1], img2.shape[2]
    CHW = S * Wl

    # --- tile sizes re-derived from this chip's VMEM (v7x: 64 MiB, v5e/v6e: 128) ---
    vmem_bytes = _tpu_vmem_bytes()
    vmem_limit = min(vmem_bytes // 2, 100 * 1024 * 1024)
    tile_budget = vmem_bytes // 8                      # per-operand budget incl. double buffer
    tv = _pick_tile(V, 128, max(128, min(V, 4096)))
    bytes_per_row = tv * 4
    max_rows = max(8, (tile_budget // (2 * bytes_per_row)) // 8 * 8)
    tr = _pick_tile(T, 8, max_rows)
    nk = T // tr
    nv = V // tv

    grid = (B, nk, nv)

    in_specs = [
        pl.BlockSpec((1, tr, tv), lambda b, k, v, L: (b, k, v)),          # logits
        pl.BlockSpec((1, tr, 1), lambda b, k, v, L: (b, k, 0)),           # labels
        pl.BlockSpec((1, S, Wl), lambda b, k, v, L: (b, 0, 0)),           # fake_image slab
        pl.BlockSpec((1, S, Wl), lambda b, k, v, L: (b, 0, 0)),           # image slab
        pl.BlockSpec((1, Hd, Tq, Tk), lambda b, k, v, L: (b, 0, 0, 0)),   # g_attn
        pl.BlockSpec((1, Hd, Tk, Tq), lambda b, k, v, L: (b, 0, 0, 0)),   # r_attn (untransposed)
    ]
    out_spec = pl.BlockSpec((1, 1, 128), lambda b, k, v, L: (b, 0, 0))

    grid_spec = pltpu.PrefetchScalarGridSpec(
        num_scalar_prefetch=1,
        grid=grid,
        in_specs=in_specs,
        out_specs=out_spec,
        scratch_shapes=[pltpu.VMEM((tr, 1), jnp.float32),   # running max
                        pltpu.VMEM((tr, 1), jnp.float32),   # running sum
                        pltpu.VMEM((tr, 1), jnp.float32)],  # running correct-logit
    )

    bytes_accessed = 4 * (B * T * V + B * T + 2 * B * CHW
                          + 2 * B * Hd * Tq * Tk + B * 128)
    cost = pl.CostEstimate(
        flops=int(6 * B * T * V + 4 * B * CHW + 12 * B * Hd * Tq * Tk),
        transcendentals=int(B * T * V),
        bytes_accessed=int(bytes_accessed))

    per_sample = pl.pallas_call(
        joint_loss_kernel,
        out_shape=jax.ShapeDtypeStruct((B, 1, 128), jnp.float32),
        grid_spec=grid_spec,
        compiler_params=pltpu.CompilerParams(
            dimension_semantics=("parallel", "arbitrary", "arbitrary"),
            vmem_limit_bytes=int(vmem_limit)),
        cost_estimate=cost,
    )(length_i, logits, labels, fimg2, img2, g_attn, r_attn)

    # Tiny (B,)-sized RF_bool-weighted batch reductions in the wrapper.
    loss_r = per_sample[:, 0, 0]
    loss_g = per_sample[:, 0, 1]
    loss_j = per_sample[:, 0, 2]
    rf_bool = (real_or_fake.reshape(B).astype(jnp.float32) == 1.0).astype(jnp.float32)
    denom = jnp.sum(rf_bool + 1e-9)
    loss = {'R': jnp.sum(loss_r * rf_bool) / denom,
            'G': jnp.sum(loss_g * rf_bool) / denom}
    if is_joint:
        loss['J'] = jnp.sum(loss_j * rf_bool) / denom
    return loss


# --------------------------------------------------------------------------- #
# pure-JAX reference (mirrors the PyTorch semantics) for validation
# --------------------------------------------------------------------------- #
def reference_losses(logits, labels, length, rf, fake_image, image, g_attn, r_attn):
    B, T, V = logits.shape
    logp = jax.nn.log_softmax(logits, axis=-1)
    safe = jnp.clip(labels[..., 0], 0, V - 1)
    ce = -jnp.take_along_axis(logp, safe[..., None], axis=-1)[..., 0]
    ce = jnp.where(labels[..., 0] == IGNORE_INDEX, 0.0, ce)
    loss_r = ce.sum(-1) / length[:, 0]
    loss_g = jnp.mean((fake_image - image) ** 2, axis=(1, 2, 3))
    r_p = jnp.transpose(r_attn, (0, 1, 3, 2))
    d = g_attn - r_p
    Tk = d.shape[-1]
    mask = (jnp.arange(Tk)[None, None, None, :]
            < length[:, 0][:, None, None, None]).astype(jnp.float32)
    mask = jnp.broadcast_to(mask, d.shape)
    loss_j = (d * d * mask).sum(axis=(1, 2, 3)) / mask.sum(axis=(1, 2, 3))
    rf_bool = (rf[:, 0] == 1.0).astype(jnp.float32)
    denom = jnp.sum(rf_bool + 1e-9)
    return {'R': jnp.sum(loss_r * rf_bool) / denom,
            'G': jnp.sum(loss_g * rf_bool) / denom,
            'J': jnp.sum(loss_j * rf_bool) / denom}


if __name__ == "__main__":
    key = jax.random.PRNGKey(0)
    B, T, V = 2, 8, 32            # batch, decoded tokens per sample, vocab
    C, H, W = 4, 16, 16           # image (NCHW)
    Hd, Tq, Tk = 4, 8, 16         # attention heads, query len, key len

    keys = jax.random.split(key, 8)
    prediction = jax.random.normal(keys[0], (B * T, V), jnp.float32)
    label = jax.random.randint(keys[1], (B, T), 0, V).astype(jnp.int32)
    label = label.at[0, 3].set(IGNORE_INDEX)        # exercise ignore_index
    label = label.at[1, 7].set(IGNORE_INDEX)
    image = jax.random.normal(keys[2], (B, C, H, W), jnp.float32)
    fake_image = jax.random.normal(keys[3], (B, C, H, W), jnp.float32)
    g_attn = jax.random.normal(keys[4], (B, Hd, Tq, Tk), jnp.float32)
    r_attn = jax.random.normal(keys[5], (B, Hd, Tk, Tq), jnp.float32)
    length = jnp.array([6.0, 4.0], jnp.float32)
    real_or_fake = jnp.array([1.0, 0.0], jnp.float32)

    preds = {
        'prediction': prediction,
        'fake_image': fake_image,
        'G_attns': [g_attn],
        'R_attns': [r_attn],
    }

    loss = joint_loss_forward(preds, image, label, length, real_or_fake, is_joint=True)
    loss = {k: jax.block_until_ready(v) for k, v in loss.items()}

    ref = reference_losses(prediction.reshape(B, T, V),
                           label.reshape(B, T, 1),
                           length.reshape(B, 1),
                           real_or_fake.reshape(B, 1),
                           fake_image, image, g_attn, r_attn)

    for k in ('R', 'G', 'J'):
        if not jnp.allclose(loss[k], ref[k], rtol=1e-4, atol=1e-5):
            raise AssertionError(f"loss[{k}] mismatch: kernel={loss[k]} ref={ref[k]}")

    print("KERNEL_OK")
</pallas_src>

<mosaic_0001>
module attributes {stable_mosaic.version = 11 : i64} {
  func.func @joint_loss_kernel(%arg0: i32, %arg1: i32, %arg2: i32, %arg3: memref<2xi32, #tpu.memory_space<smem>>, %arg4: memref<1x8x32xf32, #tpu.memory_space<vmem>>, %arg5: memref<1x8x1xi32, #tpu.memory_space<vmem>>, %arg6: memref<1x8x128xf32, #tpu.memory_space<vmem>>, %arg7: memref<1x8x128xf32, #tpu.memory_space<vmem>>, %arg8: memref<1x4x8x16xf32, #tpu.memory_space<vmem>>, %arg9: memref<1x4x16x8xf32, #tpu.memory_space<vmem>>, %arg10: memref<1x1x128xf32, #tpu.memory_space<vmem>>, %arg11: memref<8x1xf32, #tpu.memory_space<vmem>>, %arg12: memref<8x1xf32, #tpu.memory_space<vmem>>, %arg13: memref<8x1xf32, #tpu.memory_space<vmem>>) attributes {dimension_semantics = [#tpu.dimension_semantics<parallel>, #tpu.dimension_semantics<arbitrary>, #tpu.dimension_semantics<arbitrary>], iteration_bounds = array<i64: 2, 1, 1>, scalar_prefetch = 1 : i64, scratch_operands = 3 : i64, tpu.core_type = #tpu.core_type<tc>, window_params = [{transform_indices = @transform_0, window_bounds = array<i64: 1, 8, 32>}, {transform_indices = @transform_1, window_bounds = array<i64: 1, 8, 1>}, {transform_indices = @transform_2, window_bounds = array<i64: 1, 8, 128>}, {transform_indices = @transform_3, window_bounds = array<i64: 1, 8, 128>}, {transform_indices = @transform_4, window_bounds = array<i64: 1, 4, 8, 16>}, {transform_indices = @transform_5, window_bounds = array<i64: 1, 4, 16, 8>}, {transform_indices = @transform_6, window_bounds = array<i64: 1, 1, 128>}]} {
    %0 = arith.index_cast %arg0 : i32 to index
    %1 = memref.load %arg3[%0] : memref<2xi32, #tpu.memory_space<smem>>
    %2 = arith.sitofp %1 : i32 to f32
    %3 = tpu.iota {dimensions = array<i32: 1>} : vector<1x128xi32>
    %c0_i32 = arith.constant 0 : i32
    %4 = arith.cmpi eq, %arg1, %c0_i32 : i32
    %c0_i32_0 = arith.constant 0 : i32
    %5 = arith.cmpi eq, %arg2, %c0_i32_0 : i32
    %6 = arith.andi %4, %5 : i1
    %c0_i32_1 = arith.constant 0 : i32
    %7 = arith.cmpi eq, %arg2, %c0_i32_1 : i32
    %c0_i32_2 = arith.constant 0 : i32
    %8 = arith.cmpi eq, %arg1, %c0_i32_2 : i32
    %9 = arith.andi %8, %7 : i1
    %10 = arith.extui %6 : i1 to i32
    %c0_i32_3 = arith.constant 0 : i32
    %11 = arith.cmpi ne, %10, %c0_i32_3 : i32
    scf.if %11 {
      %c0_28 = arith.constant 0 : index
      %c0_29 = arith.constant 0 : index
      %c0_30 = arith.constant 0 : index
      %52 = vector.load %arg6[%c0_28, %c0_29, %c0_30] : memref<1x8x128xf32, #tpu.memory_space<vmem>>, vector<1x8x128xf32>
      %53 = vector.shape_cast %52 : vector<1x8x128xf32> to vector<8x128xf32>
      %c0_31 = arith.constant 0 : index
      %c0_32 = arith.constant 0 : index
      %c0_33 = arith.constant 0 : index
      %54 = vector.load %arg7[%c0_31, %c0_32, %c0_33] : memref<1x8x128xf32, #tpu.memory_space<vmem>>, vector<1x8x128xf32>
      %55 = vector.shape_cast %54 : vector<1x8x128xf32> to vector<8x128xf32>
      %56 = arith.subf %53, %55 : vector<8x128xf32>
      %57 = arith.mulf %56, %56 : vector<8x128xf32>
      %58 = vector.shape_cast %57 : vector<8x128xf32> to vector<1x8x128xf32>
      %cst_34 = arith.constant dense<0.000000e+00> : vector<1xf32>
      %59 = vector.multi_reduction <add>, %58, %cst_34 [1, 2] : vector<1x8x128xf32> to vector<1xf32>
      %60 = vector.shape_cast %59 : vector<1xf32> to vector<1x1x1xf32>
      %61 = vector.extract %60[0, 0, 0] : f32 from vector<1x1x1xf32>
      %cst_35 = arith.constant 9.765625E-4 : f32
      %62 = arith.mulf %61, %cst_35 : f32
      %c0_36 = arith.constant 0 : index
      %c0_37 = arith.constant 0 : index
      %c0_38 = arith.constant 0 : index
      %c0_39 = arith.constant 0 : index
      %63 = vector.load %arg8[%c0_36, %c0_37, %c0_38, %c0_39] : memref<1x4x8x16xf32, #tpu.memory_space<vmem>>, vector<1x4x8x16xf32>
      %64 = vector.shape_cast %63 : vector<1x4x8x16xf32> to vector<4x8x16xf32>
      %c0_40 = arith.constant 0 : index
      %c0_41 = arith.constant 0 : index
      %c0_42 = arith.constant 0 : index
      %c0_43 = arith.constant 0 : index
      %65 = vector.load %arg9[%c0_40, %c0_41, %c0_42, %c0_43] : memref<1x4x16x8xf32, #tpu.memory_space<vmem>>, vector<1x4x16x8xf32>
      %66 = vector.shape_cast %65 : vector<1x4x16x8xf32> to vector<4x16x8xf32>
      %67 = tpu.iota {dimensions = array<i32: 2>} : vector<4x8x16xi32>
      %68 = arith.sitofp %67 : vector<4x8x16xi32> to vector<4x8x16xf32>
      %69 = vector.broadcast %2 : f32 to vector<4x8x16xf32>
      %70 = arith.cmpf olt, %68, %69 : vector<4x8x16xf32>
      %71 = arith.extui %70 : vector<4x8x16xi1> to vector<4x8x16xi32>
      %72 = arith.sitofp %71 : vector<4x8x16xi32> to vector<4x8x16xf32>
      %73 = tpu.iota {dimensions = array<i32: 1>} : vector<4x16x8xi32>
      %74 = arith.sitofp %73 : vector<4x16x8xi32> to vector<4x16x8xf32>
      %75 = vector.broadcast %2 : f32 to vector<4x16x8xf32>
      %76 = arith.cmpf olt, %74, %75 : vector<4x16x8xf32>
      %77 = arith.extui %76 : vector<4x16x8xi1> to vector<4x16x8xi32>
      %78 = arith.sitofp %77 : vector<4x16x8xi32> to vector<4x16x8xf32>
      %79 = arith.mulf %64, %72 : vector<4x8x16xf32>
      %80 = arith.mulf %79, %64 : vector<4x8x16xf32>
      %81 = vector.shape_cast %80 : vector<4x8x16xf32> to vector<1x4x8x16xf32>
      %cst_44 = arith.constant dense<0.000000e+00> : vector<1xf32>
      %82 = vector.multi_reduction <add>, %81, %cst_44 [1, 2, 3] : vector<1x4x8x16xf32> to vector<1xf32>
      %83 = vector.shape_cast %82 : vector<1xf32> to vector<1x1x1x1xf32>
      %84 = vector.extract %83[0, 0, 0, 0] : f32 from vector<1x1x1x1xf32>
      %85 = arith.mulf %66, %66 : vector<4x16x8xf32>
      %86 = arith.mulf %85, %78 : vector<4x16x8xf32>
      %87 = vector.shape_cast %86 : vector<4x16x8xf32> to vector<1x4x16x8xf32>
      %cst_45 = arith.constant dense<0.000000e+00> : vector<1xf32>
      %88 = vector.multi_reduction <add>, %87, %cst_45 [1, 2, 3] : vector<1x4x16x8xf32> to vector<1xf32>
      %89 = vector.shape_cast %88 : vector<1xf32> to vector<1x1x1x1xf32>
      %90 = vector.extract %89[0, 0, 0, 0] : f32 from vector<1x1x1x1xf32>
      %cst_46 = arith.constant dense<0.000000e+00> : vector<4x8x8xf32>
      %91 = tpu.matmul %79, %66, %cst_46 {dimension_numbers = #tpu.dot_dimension_numbers<[2], [1], [1], [2], [0, 0, 0, 1, 1, 2], [0], [0]>} : vector<4x8x16xf32>, vector<4x16x8xf32>, vector<4x8x8xf32> -> vector<4x8x8xf32>
      %92 = tpu.iota {dimensions = array<i32: 1>} : vector<4x8x8xi32>
      %93 = tpu.iota {dimensions = array<i32: 2>} : vector<4x8x8xi32>
      %94 = arith.cmpi eq, %92, %93 : vector<4x8x8xi32>
      %cst_47 = arith.constant 0.000000e+00 : f32
      %95 = vector.broadcast %cst_47 : f32 to vector<4x8x8xf32>
      %96 = arith.select %94, %91, %95 : vector<4x8x8xi1>, vector<4x8x8xf32>
      %97 = vector.shape_cast %96 : vector<4x8x8xf32> to vector<1x4x8x8xf32>
      %cst_48 = arith.constant dense<0.000000e+00> : vector<1xf32>
      %98 = vector.multi_reduction <add>, %97, %cst_48 [1, 2, 3] : vector<1x4x8x8xf32> to vector<1xf32>
      %99 = vector.shape_cast %98 : vector<1xf32> to vector<1x1x1x1xf32>
      %100 = vector.extract %99[0, 0, 0, 0] : f32 from vector<1x1x1x1xf32>
      %cst_49 = arith.constant 1.600000e+01 : f32
      %101 = arith.minimumf %2, %cst_49 : f32
      %cst_50 = arith.constant 3.200000e+01 : f32
      %102 = arith.mulf %cst_50, %101 : f32
      %103 = arith.addf %84, %90 : f32
      %cst_51 = arith.constant 2.000000e+00 : f32
      %104 = arith.mulf %cst_51, %100 : f32
      %105 = arith.subf %103, %104 : f32
      %106 = arith.divf %105, %102 : f32
      %c1_i32 = arith.constant 1 : i32
      %107 = vector.broadcast %c1_i32 : i32 to vector<1x128xi32>
      %108 = arith.cmpi eq, %3, %107 : vector<1x128xi32>
      %cst_52 = arith.constant 0.000000e+00 : f32
      %109 = vector.broadcast %62 : f32 to vector<1x128xf32>
      %110 = vector.broadcast %cst_52 : f32 to vector<1x128xf32>
      %111 = arith.select %108, %109, %110 : vector<1x128xi1>, vector<1x128xf32>
      %c2_i32 = arith.constant 2 : i32
      %112 = vector.broadcast %c2_i32 : i32 to vector<1x128xi32>
      %113 = arith.cmpi eq, %3, %112 : vector<1x128xi32>
      %cst_53 = arith.constant 0.000000e+00 : f32
      %114 = vector.broadcast %106 : f32 to vector<1x128xf32>
      %115 = vector.broadcast %cst_53 : f32 to vector<1x128xf32>
      %116 = arith.select %113, %114, %115 : vector<1x128xi1>, vector<1x128xf32>
      %117 = arith.addf %111, %116 : vector<1x128xf32>
      %c0_54 = arith.constant 0 : index
      %c0_55 = arith.constant 0 : index
      %c0_56 = arith.constant 0 : index
      %118 = vector.load %arg10[%c0_54, %c0_55, %c0_56] : memref<1x1x128xf32, #tpu.memory_space<vmem>>, vector<1x1x128xf32>
      %119 = vector.shape_cast %118 : vector<1x1x128xf32> to vector<1x128xf32>
      %120 = vector.shape_cast %117 : vector<1x128xf32> to vector<1x1x128xf32>
      tpu.vector_store %arg10[%c0_54, %c0_55, %c0_56], %120 {strides = array<i32>} : memref<1x1x128xf32, #tpu.memory_space<vmem>>, vector<1x1x128xf32>,
    } else {
    }
    %c0_i32_4 = arith.constant 0 : i32
    %12 = arith.cmpi eq, %arg2, %c0_i32_4 : i32
    %13 = arith.extui %12 : i1 to i32
    %c0_i32_5 = arith.constant 0 : i32
    %14 = arith.cmpi ne, %13, %c0_i32_5 : i32
    scf.if %14 {
      %cst_28 = arith.constant 0xFF800000 : f32
      %52 = vector.broadcast %cst_28 : f32 to vector<8x1xf32>
      %c0_29 = arith.constant 0 : index
      %c0_30 = arith.constant 0 : index
      %53 = vector.load %arg11[%c0_29, %c0_30] : memref<8x1xf32, #tpu.memory_space<vmem>>, vector<8x1xf32>
      tpu.vector_store %arg11[%c0_29, %c0_30], %52 {strides = array<i32>} : memref<8x1xf32, #tpu.memory_space<vmem>>, vector<8x1xf32>,
      %cst_31 = arith.constant 0.000000e+00 : f32
      %54 = vector.broadcast %cst_31 : f32 to vector<8x1xf32>
      %c0_32 = arith.constant 0 : index
      %c0_33 = arith.constant 0 : index
      %55 = vector.load %arg12[%c0_32, %c0_33] : memref<8x1xf32, #tpu.memory_space<vmem>>, vector<8x1xf32>
      tpu.vector_store %arg12[%c0_32, %c0_33], %54 {strides = array<i32>} : memref<8x1xf32, #tpu.memory_space<vmem>>, vector<8x1xf32>,
      %cst_34 = arith.constant 0.000000e+00 : f32
      %56 = vector.broadcast %cst_34 : f32 to vector<8x1xf32>
      %c0_35 = arith.constant 0 : index
      %c0_36 = arith.constant 0 : index
      %57 = vector.load %arg13[%c0_35, %c0_36] : memref<8x1xf32, #tpu.memory_space<vmem>>, vector<8x1xf32>
      tpu.vector_store %arg13[%c0_35, %c0_36], %56 {strides = array<i32>} : memref<8x1xf32, #tpu.memory_space<vmem>>, vector<8x1xf32>,
    } else {
    }
    %c0 = arith.constant 0 : index
    %c0_6 = arith.constant 0 : index
    %c0_7 = arith.constant 0 : index
    %15 = vector.load %arg4[%c0, %c0_6, %c0_7] : memref<1x8x32xf32, #tpu.memory_space<vmem>>, vector<1x8x32xf32>
    %16 = vector.shape_cast %15 : vector<1x8x32xf32> to vector<8x32xf32>
    %c0_8 = arith.constant 0 : index
    %c0_9 = arith.constant 0 : index
    %c0_10 = arith.constant 0 : index
    %17 = vector.load %arg5[%c0_8, %c0_9, %c0_10] : memref<1x8x1xi32, #tpu.memory_space<vmem>>, vector<1x8x1xi32>
    %18 = vector.shape_cast %17 : vector<1x8x1xi32> to vector<8x1xi32>
    %19 = tpu.iota {dimensions = array<i32: 1>} : vector<8x32xi32>
    %c32_i32 = arith.constant 32 : i32
    %20 = arith.muli %arg2, %c32_i32 : i32
    %21 = vector.broadcast %20 : i32 to vector<8x32xi32>
    %22 = arith.addi %19, %21 : vector<8x32xi32>
    %c0_11 = arith.constant 0 : index
    %c0_12 = arith.constant 0 : index
    %23 = vector.load %arg11[%c0_11, %c0_12] : memref<8x1xf32, #tpu.memory_space<vmem>>, vector<8x1xf32>
    %cst = arith.constant dense<0xFF800000> : vector<8xf32>
    %24 = vector.multi_reduction <maximumf>, %16, %cst [1] : vector<8x32xf32> to vector<8xf32>
    %25 = vector.shape_cast %24 : vector<8xf32> to vector<8x1xf32>
    %26 = arith.maximumf %23, %25 : vector<8x1xf32>
    %27 = vector.broadcast %26 : vector<8x1xf32> to vector<8x32xf32>
    %28 = arith.subf %16, %27 : vector<8x32xf32>
    %29 = math.exp %28 : vector<8x32xf32>
    %c0_13 = arith.constant 0 : index
    %c0_14 = arith.constant 0 : index
    %30 = vector.load %arg12[%c0_13, %c0_14] : memref<8x1xf32, #tpu.memory_space<vmem>>, vector<8x1xf32>
    %31 = arith.subf %23, %26 : vector<8x1xf32>
    %32 = math.exp %31 : vector<8x1xf32>
    %33 = arith.mulf %30, %32 : vector<8x1xf32>
    %cst_15 = arith.constant dense<0.000000e+00> : vector<8xf32>
    %34 = vector.multi_reduction <add>, %29, %cst_15 [1] : vector<8x32xf32> to vector<8xf32>
    %35 = vector.shape_cast %34 : vector<8xf32> to vector<8x1xf32>
    %36 = arith.addf %33, %35 : vector<8x1xf32>
    %c0_16 = arith.constant 0 : index
    %c0_17 = arith.constant 0 : index
    %37 = vector.load %arg12[%c0_16, %c0_17] : memref<8x1xf32, #tpu.memory_space<vmem>>, vector<8x1xf32>
    tpu.vector_store %arg12[%c0_16, %c0_17], %36 {strides = array<i32>} : memref<8x1xf32, #tpu.memory_space<vmem>>, vector<8x1xf32>,
    %c0_18 = arith.constant 0 : index
    %c0_19 = arith.constant 0 : index
    %38 = vector.load %arg11[%c0_18, %c0_19] : memref<8x1xf32, #tpu.memory_space<vmem>>, vector<8x1xf32>
    tpu.vector_store %arg11[%c0_18, %c0_19], %26 {strides = array<i32>} : memref<8x1xf32, #tpu.memory_space<vmem>>, vector<8x1xf32>,
    %c0_20 = arith.constant 0 : index
    %c0_21 = arith.constant 0 : index
    %39 = vector.load %arg13[%c0_20, %c0_21] : memref<8x1xf32, #tpu.memory_space<vmem>>, vector<8x1xf32>
    %40 = vector.broadcast %18 : vector<8x1xi32> to vector<8x32xi32>
    %41 = arith.cmpi eq, %22, %40 : vector<8x32xi32>
    %cst_22 = arith.constant 0.000000e+00 : f32
    %42 = vector.broadcast %cst_22 : f32 to vector<8x32xf32>
    %43 = arith.select %41, %16, %42 : vector<8x32xi1>, vector<8x32xf32>
    %cst_23 = arith.constant dense<0.000000e+00> : vector<8xf32>
    %44 = vector.multi_reduction <add>, %43, %cst_23 [1] : vector<8x32xf32> to vector<8xf32>
    %45 = vector.shape_cast %44 : vector<8xf32> to vector<8x1xf32>
    %46 = arith.addf %39, %45 : vector<8x1xf32>
    %c0_24 = arith.constant 0 : index
    %c0_25 = arith.constant 0 : index
    %47 = vector.load %arg13[%c0_24, %c0_25] : memref<8x1xf32, #tpu.memory_space<vmem>>, vector<8x1xf32>
    tpu.vector_store %arg13[%c0_24, %c0_25], %46 {strides = array<i32>} : memref<8x1xf32, #tpu.memory_space<vmem>>, vector<8x1xf32>,
    %48 = arith.extui %7 : i1 to i32
    %c0_i32_26 = arith.constant 0 : i32
    %49 = arith.cmpi ne, %48, %c0_i32_26 : i32
    scf.if %49 {
      %c0_28 = arith.constant 0 : index
      %c0_29 = arith.constant 0 : index
      %52 = vector.load %arg11[%c0_28, %c0_29] : memref<8x1xf32, #tpu.memory_space<vmem>>, vector<8x1xf32>
      %c0_30 = arith.constant 0 : index
      %c0_31 = arith.constant 0 : index
      %53 = vector.load %arg12[%c0_30, %c0_31] : memref<8x1xf32, #tpu.memory_space<vmem>>, vector<8x1xf32>
      %54 = math.log %53 : vector<8x1xf32>
      %55 = arith.addf %52, %54 : vector<8x1xf32>
      %c0_32 = arith.constant 0 : index
      %c0_33 = arith.constant 0 : index
      %56 = vector.load %arg13[%c0_32, %c0_33] : memref<8x1xf32, #tpu.memory_space<vmem>>, vector<8x1xf32>
      %57 = arith.subf %55, %56 : vector<8x1xf32>
      %c515_i32 = arith.constant 515 : i32
      %58 = vector.broadcast %c515_i32 : i32 to vector<8x1xi32>
      %59 = arith.cmpi eq, %18, %58 : vector<8x1xi32>
      %cst_34 = arith.constant 0.000000e+00 : f32
      %60 = vector.broadcast %cst_34 : f32 to vector<8x1xf32>
      %61 = arith.select %59, %60, %57 : vector<8x1xi1>, vector<8x1xf32>
      %c0_35 = arith.constant 0 : index
      %c0_36 = arith.constant 0 : index
      %c0_37 = arith.constant 0 : index
      %62 = vector.load %arg10[%c0_35, %c0_36, %c0_37] : memref<1x1x128xf32, #tpu.memory_space<vmem>>, vector<1x1x128xf32>
      %63 = vector.shape_cast %62 : vector<1x1x128xf32> to vector<1x128xf32>
      %c0_i32_38 = arith.constant 0 : i32
      %64 = vector.broadcast %c0_i32_38 : i32 to vector<1x128xi32>
      %65 = arith.cmpi eq, %3, %64 : vector<1x128xi32>
      %66 = vector.shape_cast %61 : vector<8x1xf32> to vector<1x8x1xf32>
      %cst_39 = arith.constant dense<0.000000e+00> : vector<1xf32>
      %67 = vector.multi_reduction <add>, %66, %cst_39 [1, 2] : vector<1x8x1xf32> to vector<1xf32>
      %68 = vector.shape_cast %67 : vector<1xf32> to vector<1x1x1xf32>
      %69 = vector.extract %68[0, 0, 0] : f32 from vector<1x1x1xf32>
      %cst_40 = arith.constant 0.000000e+00 : f32
      %70 = vector.broadcast %69 : f32 to vector<1x128xf32>
      %71 = vector.broadcast %cst_40 : f32 to vector<1x128xf32>
      %72 = arith.select %65, %70, %71 : vector<1x128xi1>, vector<1x128xf32>
      %73 = arith.addf %63, %72 : vector<1x128xf32>
      %c0_41 = arith.constant 0 : index
      %c0_42 = arith.constant 0 : index
      %c0_43 = arith.constant 0 : index
      %74 = vector.load %arg10[%c0_41, %c0_42, %c0_43] : memref<1x1x128xf32, #tpu.memory_space<vmem>>, vector<1x1x128xf32>
      %75 = vector.shape_cast %74 : vector<1x1x128xf32> to vector<1x128xf32>
      %76 = vector.shape_cast %73 : vector<1x128xf32> to vector<1x1x128xf32>
      tpu.vector_store %arg10[%c0_41, %c0_42, %c0_43], %76 {strides = array<i32>} : memref<1x1x128xf32, #tpu.memory_space<vmem>>, vector<1x1x128xf32>,
    } else {
    }
    %50 = arith.extui %9 : i1 to i32
    %c0_i32_27 = arith.constant 0 : i32
    %51 = arith.cmpi ne, %50, %c0_i32_27 : i32
    scf.if %51 {
      %c0_28 = arith.constant 0 : index
      %c0_29 = arith.constant 0 : index
      %c0_30 = arith.constant 0 : index
      %52 = vector.load %arg10[%c0_28, %c0_29, %c0_30] : memref<1x1x128xf32, #tpu.memory_space<vmem>>, vector<1x1x128xf32>
      %53 = vector.shape_cast %52 : vector<1x1x128xf32> to vector<1x128xf32>
      %c0_i32_31 = arith.constant 0 : i32
      %54 = vector.broadcast %c0_i32_31 : i32 to vector<1x128xi32>
      %55 = arith.cmpi eq, %3, %54 : vector<1x128xi32>
      %cst_32 = arith.constant 1.000000e+00 : f32
      %56 = arith.divf %cst_32, %2 : f32
      %cst_33 = arith.constant 1.000000e+00 : f32
      %57 = vector.broadcast %56 : f32 to vector<1x128xf32>
      %58 = vector.broadcast %cst_33 : f32 to vector<1x128xf32>
      %59 = arith.select %55, %57, %58 : vector<1x128xi1>, vector<1x128xf32>
      %60 = arith.mulf %53, %59 : vector<1x128xf32>
      %c0_34 = arith.constant 0 : index
      %c0_35 = arith.constant 0 : index
      %c0_36 = arith.constant 0 : index
      %61 = vector.load %arg10[%c0_34, %c0_35, %c0_36] : memref<1x1x128xf32, #tpu.memory_space<vmem>>, vector<1x1x128xf32>
      %62 = vector.shape_cast %61 : vector<1x1x128xf32> to vector<1x128xf32>
      %63 = vector.shape_cast %60 : vector<1x128xf32> to vector<1x1x128xf32>
      tpu.vector_store %arg10[%c0_34, %c0_35, %c0_36], %63 {strides = array<i32>} : memref<1x1x128xf32, #tpu.memory_space<vmem>>, vector<1x1x128xf32>,
    } else {
    }
    return
  }
  func.func @transform_0(%arg0: i32, %arg1: i32, %arg2: i32, %arg3: memref<2xi32, #tpu.memory_space<smem>>) -> (i32, i32, i32) {
    %c0_i32 = arith.constant 0 : i32
    return %arg0, %arg1, %arg2 : i32, i32, i32
  }
  func.func @transform_1(%arg0: i32, %arg1: i32, %arg2: i32, %arg3: memref<2xi32, #tpu.memory_space<smem>>) -> (i32, i32, i32) {
    %c0_i32 = arith.constant 0 : i32
    %c0_i32_0 = arith.constant 0 : i32
    return %arg0, %arg1, %c0_i32 : i32, i32, i32
  }
  func.func @transform_2(%arg0: i32, %arg1: i32, %arg2: i32, %arg3: memref<2xi32, #tpu.memory_space<smem>>) -> (i32, i32, i32) {
    %c0_i32 = arith.constant 0 : i32
    %c0_i32_0 = arith.constant 0 : i32
    %c0_i32_1 = arith.constant 0 : i32
    return %arg0, %c0_i32, %c0_i32_0 : i32, i32, i32
  }
  func.func @transform_3(%arg0: i32, %arg1: i32, %arg2: i32, %arg3: memref<2xi32, #tpu.memory_space<smem>>) -> (i32, i32, i32) {
    %c0_i32 = arith.constant 0 : i32
    %c0_i32_0 = arith.constant 0 : i32
    %c0_i32_1 = arith.constant 0 : i32
    return %arg0, %c0_i32, %c0_i32_0 : i32, i32, i32
  }
  func.func @transform_4(%arg0: i32, %arg1: i32, %arg2: i32, %arg3: memref<2xi32, #tpu.memory_space<smem>>) -> (i32, i32, i32, i32) {
    %c0_i32 = arith.constant 0 : i32
    %c0_i32_0 = arith.constant 0 : i32
    %c0_i32_1 = arith.constant 0 : i32
    %c0_i32_2 = arith.constant 0 : i32
    return %arg0, %c0_i32, %c0_i32_0, %c0_i32_1 : i32, i32, i32, i32
  }
  func.func @transform_5(%arg0: i32, %arg1: i32, %arg2: i32, %arg3: memref<2xi32, #tpu.memory_space<smem>>) -> (i32, i32, i32, i32) {
    %c0_i32 = arith.constant 0 : i32
    %c0_i32_0 = arith.constant 0 : i32
    %c0_i32_1 = arith.constant 0 : i32
    %c0_i32_2 = arith.constant 0 : i32
    return %arg0, %c0_i32, %c0_i32_0, %c0_i32_1 : i32, i32, i32, i32
  }
  func.func @transform_6(%arg0: i32, %arg1: i32, %arg2: i32, %arg3: memref<2xi32, #tpu.memory_space<smem>>) -> (i32, i32, i32) {
    %c0_i32 = arith.constant 0 : i32
    %c0_i32_0 = arith.constant 0 : i32
    %c0_i32_1 = arith.constant 0 : i32
    return %arg0, %c0_i32, %c0_i32_0 : i32, i32, i32
  }
}

</mosaic_0001>

<llo_original>
// kernel: tpu_custom_call.1
$region0: #{tpu_custom_call.1}
  #allocation0 [shape = 'u32[]', space=smem, size = 0x4, offset = 0x4, fixed_abs, tag = 'smem constant byte address 0x4 - core index']
  #allocation1 [shape = 'u32[144,128]{1,0:T(1,128)}', space=vmem, size = 0x12000, scoped, tag = 'internal scratch']
  #allocation2 [shape = 'f32[8,1]{1,0:T(8,128)}', space=vmem, size = 0x1000, scoped, tag = 'scratch operand']
  #allocation3 [shape = 'f32[8,1]{1,0:T(8,128)}', space=vmem, size = 0x1000, scoped, tag = 'scratch operand']
  #allocation4 [shape = 'f32[8,1]{1,0:T(8,128)}', space=vmem, size = 0x1000, scoped, tag = 'scratch operand']
  #allocation5 [shape = 's32[1]{0}', space=sflag, size = 0x4, scoped, tag = 'scoped memory for tpu_custom_call.1']
  #allocation6 [shape = 'u8[512]{0}', space=smem, size = 0x200, scoped, tag = 'prefetched SMEM operand 0']
  %s0 = inlined_call_operand.vmem [shape: s32[2], index: 0, kind: input, shape index: {}]
  %s1 = inlined_call_operand.vmem [shape: f32[2,8,32], index: 1, kind: input, shape index: {}]
  %s2 = inlined_call_operand.vmem [shape: s32[2,8,1], index: 2, kind: input, shape index: {}]
  %s3 = inlined_call_operand.vmem [shape: f32[2,8,128], index: 3, kind: input, shape index: {}]
  %s4 = inlined_call_operand.vmem [shape: f32[2,8,128], index: 4, kind: input, shape index: {}]
  %s5 = inlined_call_operand.vmem [shape: f32[2,4,8,16], index: 5, kind: input, shape index: {}]
  %s6 = inlined_call_operand.vmem [shape: f32[2,4,16,8], index: 6, kind: input, shape index: {}]
  %s7 = inlined_call_operand.hbm [shape: f32[2,1,128], index: 7, kind: output, shape index: {}]
  %s8 = sld [smem:[#allocation0]]
  $region73: #{tpu_custom_call.1} parent=0
    _
  %s10 = ssub.s32 1, %s8
  %s11 = scalar_select 0, %s10, %s8
  %s12 = sshll.u32 %s0, 4
  %s13 = int_to_ptr.vmem [resolvable:$true] %s12
  %15 = dma.vmem_to_smem %s13, 16, [#allocation6], [#allocation5]
  %16 = dma.done [#allocation5], 16
  %17 = sfence
  $region1: #{tpu_custom_call.1} parent=0
    #allocation7 [shape = 'u8[1024]{0}', space=vmem, size = 0x400, scoped, tag = 'output window, operand 0']
    #allocation8 [shape = 's32[2]{0}', space=sflag, size = 0x8, scoped, tag = 'scoped memory for tpu_custom_call.1']
    %18 = vsyncpa [#allocation8], 0
    %s19 = scalar_lea.sflag [#allocation8], 1
    %20 = vsyncpa %s19, 0
    loop: start=0, step=1, limit=4
    $region2: #{tpu_custom_call.1} parent=1 // loop_pre_header
      _
    $region3: #{tpu_custom_call.1} parent=1 // loop_header
      %s22 = sphi 0, %s26
      %p23 = scmp.ge.s32.totalorder %s22, 4
      %s29 = sphi 0, %s48
      %s30 = sphi 0, %s44
      %s31 = sphi 0, %s40
      %s32 = sphi 0, %s29
      %s33 = sphi 0, %s30
      %s34 = sphi 0, %s31
      %s35 = sphi 0, %s32
      %s36 = sphi 0, %s33
      %s37 = sphi 0, %s34
      %s55 = sphi 0, %s57
      %s58 = sphi 0, %s55
      %s59 = sphi 0, %s58
      %s75 = sphi 0, %s59
      %s83 = sphi 0, %s85
      %s86 = sphi 0, %s83
      %s87 = sphi 0, %s86
      %s103 = sphi 0, %s87
      %s109 = sphi 0, %s111
      %s112 = sphi 0, %s109
      %s113 = sphi 0, %s112
      %s129 = sphi 0, %s113
      %s135 = sphi 0, %s137
      %s138 = sphi 0, %s135
      %s139 = sphi 0, %s138
      %s155 = sphi 0, %s139
      %s161 = sphi 0, %s163
      %s164 = sphi 0, %s161
      %s165 = sphi 0, %s164
      %s181 = sphi 0, %s165
      %s187 = sphi 0, %s189
      %s190 = sphi 0, %s187
      %s191 = sphi 0, %s190
      %s207 = sphi 0, %s191
      %s213 = sphi 0, %s215
      %s216 = sphi 0, %s213
      %s217 = sphi 0, %s216
      %s233 = sphi 0, %s217
    $region4: #{tpu_custom_call.1} parent=1 // loop_header_branch
      %25 = sbr.rel (%p23) target = $region8
    $region5: #{tpu_custom_call.1} parent=1 // loop_body
      %s27 = ssub.s32 %s22, 1
      %s28 = ssub.s32 %s22, 2
      %s38 = sadd.s32 1, %s31
      %p39 = scmp.ge.s32.totalorder %s38, 1
      %s40 = scalar_select %p39, 0, %s38
      %s41 = sadd.s32 1, %s30
      %s42 = scalar_select %p39, %s41, %s30
      %p43 = scmp.ge.s32.totalorder %s42, 1
      %s44 = scalar_select %p43, 0, %s42
      %s45 = sadd.s32 1, %s29
      %s46 = scalar_select %p43, %s45, %s29
      %p47 = scmp.ge.s32.totalorder %s46, 2
      %s48 = scalar_select %p47, 0, %s46
      %s49 = ssub.s32 %s29, %s48
      %s50 = ssub.s32 %s30, %s44
      %s51 = sor.u32 %s49, %s50
      %s52 = ssub.s32 %s31, %s40
      %s53 = sor.u32 %s51, %s52
      %p54 = scmp.eq.s32.totalorder %s53, 0
      %s56 = sadd.s32 %s55, 1
      %s57 = scalar_select %p54, %s55, %s56
      %p60 = pneg %p54
      %p61 = scmp.eq.s32.totalorder %s22, 1
      %p62 = por %p60, %p61
      %p63 = scmp.ne.s32.totalorder %s55, %s58
      %p64 = scmp.eq.s32.totalorder %s22, 0
      %p65 = por %p63, %p64
      %p66 = scmp.ne.s32.totalorder %s55, %s58
      %p67 = scmp.eq.s32.totalorder %s27, 1
      %p68 = por %p66, %p67
      %p69 = scmp.ne.s32.totalorder %s58, %s59
      %p70 = scmp.eq.s32.totalorder %s27, 0
      %p71 = por %p69, %p70
      %p72 = scmp.ne.s32.totalorder %s58, %s59
      %p73 = scmp.eq.s32.totalorder %s28, 1
      %p74 = por %p72, %p73
      %p76 = scmp.ne.s32.totalorder %s59, %s75
      %p77 = scmp.eq.s32.totalorder %s28, 0
      %p78 = por %p76, %p77
      %s79 = ssub.s32 %s29, %s48
      %s80 = ssub.s32 %s30, %s44
      %s81 = sor.u32 %s79, %s80
      %p82 = scmp.eq.s32.totalorder %s81, 0
      %s84 = sadd.s32 %s83, 1
      %s85 = scalar_select %p82, %s83, %s84
      %p88 = pneg %p82
      %p89 = scmp.eq.s32.totalorder %s22, 1
      %p90 = por %p88, %p89
      %p91 = scmp.ne.s32.totalorder %s83, %s86
      %p92 = scmp.eq.s32.totalorder %s22, 0
      %p93 = por %p91, %p92
      %p94 = scmp.ne.s32.totalorder %s83, %s86
      %p95 = scmp.eq.s32.totalorder %s27, 1
      %p96 = por %p94, %p95
      %p97 = scmp.ne.s32.totalorder %s86, %s87
      %p98 = scmp.eq.s32.totalorder %s27, 0
      %p99 = por %p97, %p98
      %p100 = scmp.ne.s32.totalorder %s86, %s87
      %p101 = scmp.eq.s32.totalorder %s28, 1
      %p102 = por %p100, %p101
      %p104 = scmp.ne.s32.totalorder %s87, %s103
      %p105 = scmp.eq.s32.totalorder %s28, 0
      %p106 = por %p104, %p105
      %s107 = ssub.s32 %s29, %s48
      %p108 = scmp.eq.s32.totalorder %s107, 0
      %s110 = sadd.s32 %s109, 1
      %s111 = scalar_select %p108, %s109, %s110
      %p114 = pneg %p108
      %p115 = scmp.eq.s32.totalorder %s22, 1
      %p116 = por %p114, %p115
      %p117 = scmp.ne.s32.totalorder %s109, %s112
      %p118 = scmp.eq.s32.totalorder %s22, 0
      %p119 = por %p117, %p118
      %p120 = scmp.ne.s32.totalorder %s109, %s112
      %p121 = scmp.eq.s32.totalorder %s27, 1
      %p122 = por %p120, %p121
      %p123 = scmp.ne.s32.totalorder %s112, %s113
      %p124 = scmp.eq.s32.totalorder %s27, 0
      %p125 = por %p123, %p124
      %p126 = scmp.ne.s32.totalorder %s112, %s113
      %p127 = scmp.eq.s32.totalorder %s28, 1
      %p128 = por %p126, %p127
      %p130 = scmp.ne.s32.totalorder %s113, %s129
      %p131 = scmp.eq.s32.totalorder %s28, 0
      %p132 = por %p130, %p131
      %s133 = ssub.s32 %s29, %s48
      %p134 = scmp.eq.s32.totalorder %s133, 0
      %s136 = sadd.s32 %s135, 1
      %s137 = scalar_select %p134, %s135, %s136
      %p140 = pneg %p134
      %p141 = scmp.eq.s32.totalorder %s22, 1
      %p142 = por %p140, %p141
      %p143 = scmp.ne.s32.totalorder %s135, %s138
      %p144 = scmp.eq.s32.totalorder %s22, 0
      %p145 = por %p143, %p144
      %p146 = scmp.ne.s32.totalorder %s135, %s138
      %p147 = scmp.eq.s32.totalorder %s27, 1
      %p148 = por %p146, %p147
      %p149 = scmp.ne.s32.totalorder %s138, %s139
      %p150 = scmp.eq.s32.totalorder %s27, 0
      %p151 = por %p149, %p150
      %p152 = scmp.ne.s32.totalorder %s138, %s139
      %p153 = scmp.eq.s32.totalorder %s28, 1
      %p154 = por %p152, %p153
      %p156 = scmp.ne.s32.totalorder %s139, %s155
      %p157 = scmp.eq.s32.totalorder %s28, 0
      %p158 = por %p156, %p157
      %s159 = ssub.s32 %s29, %s48
      %p160 = scmp.eq.s32.totalorder %s159, 0
      %s162 = sadd.s32 %s161, 1
      %s163 = scalar_select %p160, %s161, %s162
      %p166 = pneg %p160
      %p167 = scmp.eq.s32.totalorder %s22, 1
      %p168 = por %p166, %p167
      %p169 = scmp.ne.s32.totalorder %s161, %s164
      %p170 = scmp.eq.s32.totalorder %s22, 0
      %p171 = por %p169, %p170
      %p172 = scmp.ne.s32.totalorder %s161, %s164
      %p173 = scmp.eq.s32.totalorder %s27, 1
      %p174 = por %p172, %p173
      %p175 = scmp.ne.s32.totalorder %s164, %s165
      %p176 = scmp.eq.s32.totalorder %s27, 0
      %p177 = por %p175, %p176
      %p178 = scmp.ne.s32.totalorder %s164, %s165
      %p179 = scmp.eq.s32.totalorder %s28, 1
      %p180 = por %p178, %p179
      %p182 = scmp.ne.s32.totalorder %s165, %s181
      %p183 = scmp.eq.s32.totalorder %s28, 0
      %p184 = por %p182, %p183
      %s185 = ssub.s32 %s29, %s48
      %p186 = scmp.eq.s32.totalorder %s185, 0
      %s188 = sadd.s32 %s187, 1
      %s189 = scalar_select %p186, %s187, %s188
      %p192 = pneg %p186
      %p193 = scmp.eq.s32.totalorder %s22, 1
      %p194 = por %p192, %p193
      %p195 = scmp.ne.s32.totalorder %s187, %s190
      %p196 = scmp.eq.s32.totalorder %s22, 0
      %p197 = por %p195, %p196
      %p198 = scmp.ne.s32.totalorder %s187, %s190
      %p199 = scmp.eq.s32.totalorder %s27, 1
      %p200 = por %p198, %p199
      %p201 = scmp.ne.s32.totalorder %s190, %s191
      %p202 = scmp.eq.s32.totalorder %s27, 0
      %p203 = por %p201, %p202
      %p204 = scmp.ne.s32.totalorder %s190, %s191
      %p205 = scmp.eq.s32.totalorder %s28, 1
      %p206 = por %p204, %p205
      %p208 = scmp.ne.s32.totalorder %s191, %s207
      %p209 = scmp.eq.s32.totalorder %s28, 0
      %p210 = por %p208, %p209
      %s211 = ssub.s32 %s29, %s48
      %p212 = scmp.eq.s32.totalorder %s211, 0
      %s214 = sadd.s32 %s213, 1
      %s215 = scalar_select %p212, %s213, %s214
      %p218 = pneg %p212
      %p219 = scmp.eq.s32.totalorder %s22, 1
      %p220 = por %p218, %p219
      %p221 = scmp.ne.s32.totalorder %s213, %s216
      %p222 = scmp.eq.s32.totalorder %s22, 0
      %p223 = por %p221, %p222
      %p224 = scmp.ne.s32.totalorder %s213, %s216
      %p225 = scmp.eq.s32.totalorder %s27, 1
      %p226 = por %p224, %p225
      %p227 = scmp.ne.s32.totalorder %s216, %s217
      %p228 = scmp.eq.s32.totalorder %s27, 0
      %p229 = por %p227, %p228
      %p230 = scmp.ne.s32.totalorder %s216, %s217
      %p231 = scmp.eq.s32.totalorder %s28, 1
      %p232 = por %p230, %p231
      %p234 = scmp.ne.s32.totalorder %s217, %s233
      %p235 = scmp.eq.s32.totalorder %s28, 0
      %p236 = por %p234, %p235
      %p237 = scmp.le.s32.totalorder 1, %s22
      %p238 = scmp.lt.s32.totalorder %s22, 3
      %p239 = pnand %p237, %p238
      %p240 = pneg %p239
      // Predicated region
      $region9: #{tpu_custom_call.1} parent=5 // pred_check
        _
      $region10: #{tpu_custom_call.1} parent=5 // pred_check_branch
        %242 = sbr.rel (%p239) target = $region12
      $region11: #{tpu_custom_call.1} parent=5 // pred_region
        %s243 = ssub.s32 %s22, 1
      $region12: #{tpu_custom_call.1} parent=5 // pred_fallthru
        _
      %p244 = scmp.lt.s32.totalorder %s22, 2
      // Predicated region
      $region13: #{tpu_custom_call.1} parent=5 // pred_check
        %p245 = pneg %p244
      $region14: #{tpu_custom_call.1} parent=5 // pred_check_branch
        %247 = sbr.rel (%p245) target = $region16
      $region15: #{tpu_custom_call.1} parent=5 // pred_region
        // Predicated region
        $region17: #{tpu_custom_call.1} parent=15 // pred_check
          %p248 = pneg %p65
        $region18: #{tpu_custom_call.1} parent=15 // pred_check_branch
          %250 = sbr.rel (%p248) target = $region20
        $region19: #{tpu_custom_call.1} parent=15 // pred_region
          %p251 = scmp.lt.s32.totalorder %s29, 1
          %s252 = scalar_select %p251, %s29, 1
          %p253 = scmp.lt.s32.totalorder %s30, 0
          %s254 = scalar_select %p253, %s30, 0
          %p255 = scmp.lt.s32.totalorder %s31, 0
          %s256 = scalar_select %p255, %s31, 0
          %s257 = sadd.s32 %s256, %s254
          %s258 = sadd.s32 %s257, %s252
          %s259 = smul.addr %s258, 8
          %s260 = scalar_lea.vmem %s1, %s259
        $region20: #{tpu_custom_call.1} parent=15 // pred_fallthru
          _
        // Predicated region
        $region21: #{tpu_custom_call.1} parent=15 // pred_check
          %p261 = pneg %p93
        $region22: #{tpu_custom_call.1} parent=15 // pred_check_branch
          %263 = sbr.rel (%p261) target = $region24
        $region23: #{tpu_custom_call.1} parent=15 // pred_region
          %p264 = scmp.lt.s32.totalorder %s29, 1
          %s265 = scalar_select %p264, %s29, 1
          %p266 = scmp.lt.s32.totalorder %s30, 0
          %s267 = scalar_select %p266, %s30, 0
          %s268 = sadd.s32 %s267, %s265
          %s269 = smul.addr %s268, 8
          %s270 = scalar_lea.vmem %s2, %s269
        $region24: #{tpu_custom_call.1} parent=15 // pred_fallthru
          _
        // Predicated region
        $region25: #{tpu_custom_call.1} parent=15 // pred_check
          %p271 = pneg %p119
        $region26: #{tpu_custom_call.1} parent=15 // pred_check_branch
          %273 = sbr.rel (%p271) target = $region28
        $region27: #{tpu_custom_call.1} parent=15 // pred_region
          %p274 = scmp.lt.s32.totalorder %s29, 1
          %s275 = scalar_select %p274, %s29, 1
          %s276 = smul.addr %s275, 8
          %s277 = scalar_lea.vmem %s3, %s276
        $region28: #{tpu_custom_call.1} parent=15 // pred_fallthru
          _
        // Predicated region
        $region29: #{tpu_custom_call.1} parent=15 // pred_check
          %p278 = pneg %p145
        $region30: #{tpu_custom_call.1} parent=15 // pred_check_branch
          %280 = sbr.rel (%p278) target = $region32
        $region31: #{tpu_custom_call.1} parent=15 // pred_region
          %p281 = scmp.lt.s32.totalorder %s29, 1
          %s282 = scalar_select %p281, %s29, 1
          %s283 = smul.addr %s282, 8
          %s284 = scalar_lea.vmem %s4, %s283
        $region32: #{tpu_custom_call.1} parent=15 // pred_fallthru
          _
        // Predicated region
        $region33: #{tpu_custom_call.1} parent=15 // pred_check
          %p285 = pneg %p171
        $region34: #{tpu_custom_call.1} parent=15 // pred_check_branch
          %287 = sbr.rel (%p285) target = $region36
        $region35: #{tpu_custom_call.1} parent=15 // pred_region
          %p288 = scmp.lt.s32.totalorder %s29, 1
          %s289 = scalar_select %p288, %s29, 1
          %s290 = smul.addr %s289, 4
          %s291 = smul.addr %s290, 8
          %s292 = scalar_lea.vmem %s5, %s291
        $region36: #{tpu_custom_call.1} parent=15 // pred_fallthru
          _
        // Predicated region
        $region37: #{tpu_custom_call.1} parent=15 // pred_check
          %p293 = pneg %p197
        $region38: #{tpu_custom_call.1} parent=15 // pred_check_branch
          %295 = sbr.rel (%p293) target = $region40
        $region39: #{tpu_custom_call.1} parent=15 // pred_region
          %p296 = scmp.lt.s32.totalorder %s29, 1
          %s297 = scalar_select %p296, %s29, 1
          %s298 = smul.addr %s297, 8
          %s299 = smul.addr %s298, 8
          %s300 = scalar_lea.vmem %s6, %s299
        $region40: #{tpu_custom_call.1} parent=15 // pred_fallthru
          _
      $region16: #{tpu_custom_call.1} parent=5 // pred_fallthru
        _
      %p301 = scmp.le.s32.totalorder 1, %s22
      %p302 = scmp.lt.s32.totalorder %s22, 3
      %p303 = pnand %p301, %p302
      %p304 = pneg %p303
      // Predicated region
      $region41: #{tpu_custom_call.1} parent=5 // pred_check
        _
      $region42: #{tpu_custom_call.1} parent=5 // pred_check_branch
        %306 = sbr.rel (%p303) target = $region44
      $region43: #{tpu_custom_call.1} parent=5 // pred_region
        %s307 = ssub.s32 %s22, 1
        %p308 = scmp.lt.s32.totalorder %s32, 1
        %s309 = scalar_select %p308, %s32, 1
        %p310 = scmp.lt.s32.totalorder %s33, 0
        %s311 = scalar_select %p310, %s33, 0
        %p312 = scmp.lt.s32.totalorder %s34, 0
        %s313 = scalar_select %p312, %s34, 0
        %s314 = sadd.s32 %s313, %s311
        %s315 = sadd.s32 %s314, %s309
        %s316 = smul.addr %s315, 8
        %s317 = scalar_lea.vmem %s1, %s316
        %p318 = pneg %p71
        %p319 = pneg %p68
        %p320 = scmp.lt.s32.totalorder %s32, 1
        %s321 = scalar_select %p320, %s32, 1
        %p322 = scmp.lt.s32.totalorder %s33, 0
        %s323 = scalar_select %p322, %s33, 0
        %s324 = sadd.s32 %s323, %s321
        %s325 = smul.addr %s324, 8
        %s326 = scalar_lea.vmem %s2, %s325
        %p327 = pneg %p99
        %p328 = pneg %p96
        %p329 = scmp.lt.s32.totalorder %s32, 1
        %s330 = scalar_select %p329, %s32, 1
        %s331 = smul.addr %s330, 8
        %s332 = scalar_lea.vmem %s3, %s331
        %p333 = pneg %p125
        %p334 = pneg %p122
        %p335 = scmp.lt.s32.totalorder %s32, 1
        %s336 = scalar_select %p335, %s32, 1
        %s337 = smul.addr %s336, 8
        %s338 = scalar_lea.vmem %s4, %s337
        %p339 = pneg %p151
        %p340 = pneg %p148
        %p341 = scmp.lt.s32.totalorder %s32, 1
        %s342 = scalar_select %p341, %s32, 1
        %s343 = smul.addr %s342, 4
        %s344 = smul.addr %s343, 8
        %s345 = scalar_lea.vmem %s5, %s344
        %p346 = pneg %p177
        %p347 = pneg %p174
        %p348 = scmp.lt.s32.totalorder %s32, 1
        %s349 = scalar_select %p348, %s32, 1
        %s350 = smul.addr %s349, 8
        %s351 = smul.addr %s350, 8
        %s352 = scalar_lea.vmem %s6, %s351
        %p353 = pneg %p203
        %p354 = pneg %p200
        %p355 = pneg %p229
        %p356 = pneg %p226
        %s357 = sand.u32 %s216, 1
        %s358 = scalar_lea.sflag [#allocation8], %s357
        %s359 = sand.u32 %s216, 1
        %s360 = scalar_lea.vmem [#allocation7], %s359
        %p361 = scmp.lt.s32.totalorder %s32, 1
        %s362 = scalar_select %p361, %s32, 1
        %p363 = scmp.lt.s32.totalorder %s33, 0
        %s364 = scalar_select %p363, %s33, 0
        %p365 = scmp.lt.s32.totalorder %s34, 0
        %s366 = scalar_select %p365, %s34, 0
        %s367 = sadd.s32 %s366, %s364
        %s368 = sadd.s32 %s367, %s362
        %s369 = smul.addr %s368, 8
        %s370 = scalar_lea.vmem %s1, %s369
        %p371 = scmp.lt.s32.totalorder %s32, 1
        %s372 = scalar_select %p371, %s32, 1
        %p373 = scmp.lt.s32.totalorder %s33, 0
        %s374 = scalar_select %p373, %s33, 0
        %s375 = sadd.s32 %s374, %s372
        %s376 = smul.addr %s375, 8
        %s377 = scalar_lea.vmem %s2, %s376
        %p378 = scmp.lt.s32.totalorder %s32, 1
        %s379 = scalar_select %p378, %s32, 1
        %s380 = smul.addr %s379, 8
        %s381 = scalar_lea.vmem %s3, %s380
        %p382 = scmp.lt.s32.totalorder %s32, 1
        %s383 = scalar_select %p382, %s32, 1
        %s384 = smul.addr %s383, 8
        %s385 = scalar_lea.vmem %s4, %s384
        %p386 = scmp.lt.s32.totalorder %s32, 1
        %s387 = scalar_select %p386, %s32, 1
        %s388 = smul.addr %s387, 4
        %s389 = smul.addr %s388, 8
        %s390 = scalar_lea.vmem %s5, %s389
        %p391 = scmp.lt.s32.totalorder %s32, 1
        %s392 = scalar_select %p391, %s32, 1
        %s393 = smul.addr %s392, 8
        %s394 = smul.addr %s393, 8
        %s395 = scalar_lea.vmem %s6, %s394
        %s396 = sld [smem:[#allocation6 + %s32]]
        %s397 = scvt.s32.f32 %s396
        %v398 = vlaneseq
        %v399 = vand.u32 %v398, 127
        %p400 = scmp.eq.s32.totalorder %s33, 0
        %p401 = scmp.eq.s32.totalorder %s34, 0
        %p402 = pnand %p400, %p401
        %p403 = pneg %p402
        // Predicated region
        $region45: #{tpu_custom_call.1} parent=43 // pred_check
          _
        $region46: #{tpu_custom_call.1} parent=43 // pred_check_branch
          %405 = sbr.rel (%p402) target = $region48
        $region47: #{tpu_custom_call.1} parent=43 // pred_region
          %v406 = vld [vmem:[%s381] sm:$0xff]
          %v407 = vld [vmem:[%s385] sm:$0xff]
          %v408 = vsub.f32 %v406, %v407
          %v409 = vmul.f32 %v408, %v408
          %410 = vadd.xlane.f32.xlu0 %v409
          %v411 = vpop.xlane.xlu0 %410
          %v412 = vrot.slane %v411, 4
          %v413 = vadd.f32 %v411, %v412
          %v414 = vrot.slane %v413, 2
          %v415 = vadd.f32 %v413, %v414
          %v416 = vrot.slane %v415, 1
          %v417 = vadd.f32 %v415, %v416
          %s418 = vtos %v417
          %s419 = smul.f32 %s418, 0.0009765625
          %v420 = vld [vmem:[%s390] sm:$0xff]
          %v421 = vld [vmem:[%s390 + $0x8] sm:$0xff]
          %v422 = vld [vmem:[%s390 + $0x10] sm:$0xff]
          %v423 = vld [vmem:[%s390 + $0x18] sm:$0xff]
          %v424 = vld [vmem:[%s395] sm:$0xff]
          %v425 = vld [vmem:[%s395 + $0x8] sm:$0xff]
          %v426 = vld [vmem:[%s395 + $0x10] sm:$0xff]
          %v427 = vld [vmem:[%s395 + $0x18] sm:$0xff]
          %v428 = vld [vmem:[%s395 + $0x20] sm:$0xff]
          %v429 = vld [vmem:[%s395 + $0x28] sm:$0xff]
          %v430 = vld [vmem:[%s395 + $0x30] sm:$0xff]
          %v431 = vld [vmem:[%s395 + $0x38] sm:$0xff]
          %v432 = vcvt.s32.f32 %v399
          %v433 = vstv %s397
          %vm434 = vcmp.lt.f32.partialorder %v432, %v433
          %v435 = vsel %vm434, 1, 0
          %v436 = vcvt.s32.f32 %v435
          %v437 = vlaneseq
          %v438 = vshrl.u32 %v437, 7
          %v439 = vadd.s32 %v438, 8
          %v440 = vcvt.s32.f32 %v438
          %v441 = vcvt.s32.f32 %v439
          %vm442 = vcmp.lt.f32.partialorder %v440, %v433
          %vm443 = vcmp.lt.f32.partialorder %v441, %v433
          %v444 = vsel %vm442, 1, 0
          %v445 = vsel %vm443, 1, 0
          %v446 = vcvt.s32.f32 %v444
          %v447 = vcvt.s32.f32 %v445
          %v448 = vmul.f32 %v420, %v436
          %v449 = vmul.f32 %v421, %v436
          %v450 = vmul.f32 %v422, %v436
          %v451 = vmul.f32 %v423, %v436
          %v452 = vmul.f32 %v448, %v420
          %v453 = vmul.f32 %v449, %v421
          %v454 = vmul.f32 %v450, %v422
          %v455 = vmul.f32 %v451, %v423
          %vm456 = vcmask 130048
          %v457 = vsel %vm456, %v452, 0.0
          %v458 = vsel %vm456, %v453, 0.0
          %v459 = vadd.f32 %v457, %v458
          %v460 = vsel %vm456, %v454, 0.0
          %v461 = vadd.f32 %v459, %v460
          %v462 = vsel %vm456, %v455, 0.0
          %v463 = vadd.f32 %v461, %v462
          %464 = vadd.xlane.f32.xlu0 %v463
          %v465 = vpop.xlane.xlu0 %464
          %v466 = vrot.slane %v465, 4
          %v467 = vadd.f32 %v465, %v466
          %v468 = vrot.slane %v467, 2
          %v469 = vadd.f32 %v467, %v468
          %v470 = vrot.slane %v469, 1
          %v471 = vadd.f32 %v469, %v470
          %s472 = vtos %v471
          %v473 = vmul.f32 %v424, %v424
          %v474 = vmul.f32 %v425, %v425
          %v475 = vmul.f32 %v426, %v426
          %v476 = vmul.f32 %v427, %v427
          %v477 = vmul.f32 %v428, %v428
          %v478 = vmul.f32 %v429, %v429
          %v479 = vmul.f32 %v430, %v430
          %v480 = vmul.f32 %v431, %v431
          %v481 = vmul.f32 %v473, %v446
          %v482 = vmul.f32 %v474, %v447
          %v483 = vmul.f32 %v475, %v446
          %v484 = vmul.f32 %v476, %v447
          %v485 = vmul.f32 %v477, %v446
          %v486 = vmul.f32 %v478, %v447
          %v487 = vmul.f32 %v479, %v446
          %v488 = vmul.f32 %v480, %v447
          %vm489 = vcmask 64512
          %v490 = vsel %vm489, %v481, 0.0
          %v491 = vsel %vm489, %v482, 0.0
          %v492 = vadd.f32 %v490, %v491
          %v493 = vsel %vm489, %v483, 0.0
          %v494 = vadd.f32 %v492, %v493
          %v495 = vsel %vm489, %v484, 0.0
          %v496 = vadd.f32 %v494, %v495
          %v497 = vsel %vm489, %v485, 0.0
          %v498 = vadd.f32 %v496, %v497
          %v499 = vsel %vm489, %v486, 0.0
          %v500 = vadd.f32 %v498, %v499
          %v501 = vsel %vm489, %v487, 0.0
          %v502 = vadd.f32 %v500, %v501
          %v503 = vsel %vm489, %v488, 0.0
          %v504 = vadd.f32 %v502, %v503
          %505 = vadd.xlane.f32.xlu0 %v504
          %v506 = vpop.xlane.xlu0 %505
          %v507 = vrot.slane %v506, 4
          %v508 = vadd.f32 %v506, %v507
          %v509 = vrot.slane %v508, 2
          %v510 = vadd.f32 %v508, %v509
          %v511 = vrot.slane %v510, 1
          %v512 = vadd.f32 %v510, %v511
          %s513 = vtos %v512
          %v515 = vsel %vm456, %v448, 0
          %517 = vmatprep.subr.mxu0 0.0
          %518 = vmatpush1.msra.mxu0 %v424
          %519 = vmatprep.subr.mxu0 0.0
          %520 = vmatpush1.msra.mxu0 %v425
          %521 = vmatprep.subr.mxu0 0.0
          %522 = vmatpush1.msra.mxu0 0.0
          %523 = vmatprep.subr.mxu0 0.0
          %524 = vmatpush1.msra.mxu0 0.0
          %525 = vmatprep.subr.mxu0 0.0
          %526 = vmatpush1.msra.mxu0 0.0
          %527 = vmatprep.subr.mxu0 0.0
          %528 = vmatpush1.msra.mxu0 0.0
          %529 = vmatprep.subr.mxu0 0.0
          %530 = vmatpush1.msra.mxu0 0.0
          %531 = vmatprep.subr.mxu0 0.0
          %532 = vmatpush1.msra.mxu0 0.0
          %533 = vmatprep.subr.mxu0 0.0
          %534 = vmatpush1.msra.mxu0 0.0
          %535 = vmatprep.subr.mxu0 0.0
          %536 = vmatpush1.msra.mxu0 0.0
          %537 = vmatprep.subr.mxu0 0.0
          %538 = vmatpush1.msra.mxu0 0.0
          %539 = vmatprep.subr.mxu0 0.0
          %540 = vmatpush1.msra.mxu0 0.0
          %541 = vmatprep.subr.mxu0 0.0
          %542 = vmatpush1.msra.mxu0 0.0
          %543 = vmatprep.subr.mxu0 0.0
          %544 = vmatpush1.msra.mxu0 0.0
          %545 = vmatprep.subr.mxu0 0.0
          %546 = vmatpush1.msra.mxu0 0.0
          %547 = vmatprep.subr.mxu0 0.0
          %548 = vmatpush1.msra.mxu0 0.0
          %549 = vmatprep.subr.mxu0 0.0
          %550 = vmatpush1.msra.mxu0 0.0
          %551 = vmatprep.subr.mxu0 0.0
          %552 = vmatpush1.msra.mxu0 0.0
          %553 = vmatprep.subr.mxu0 0.0
          %554 = vmatpush1.msra.mxu0 0.0
          %555 = vmatprep.subr.mxu0 0.0
          %556 = vmatpush1.msra.mxu0 0.0
          %557 = vmatprep.subr.mxu0 0.0
          %558 = vmatpush1.msra.mxu0 0.0
          %559 = vmatprep.subr.mxu0 0.0
          %560 = vmatpush1.msra.mxu0 0.0
          %561 = vmatprep.subr.mxu0 0.0
          %562 = vmatpush1.msra.mxu0 0.0
          %563 = vmatprep.subr.mxu0 0.0
          %564 = vmatpush1.msra.mxu0 0.0
          %565 = vmatprep.subr.mxu0 0.0
          %566 = vmatpush1.msra.mxu0 0.0
          %567 = vmatprep.subr.mxu0 0.0
          %568 = vmatpush1.msra.mxu0 0.0
          %569 = vmatprep.subr.mxu0 0.0
          %570 = vmatpush1.msra.mxu0 0.0
          %571 = vmatprep.subr.mxu0 0.0
          %572 = vmatpush1.msra.mxu0 0.0
          %573 = vmatprep.subr.mxu0 0.0
          %574 = vmatpush1.msra.mxu0 0.0
          %575 = vmatprep.subr.mxu0 0.0
          %576 = vmatpush1.msra.mxu0 0.0
          %577 = vmatprep.subr.mxu0 0.0
          %578 = vmatpush1.msra.mxu0 0.0
          %579 = vmatprep.subr.mxu0 0.0
          %580 = vmatpush1.msra.mxu0 0.0
          %581 = vmatprep.mubr.f32.mxu0 0.0
          %582 = vmatmul.mubr.f32.gmra.mrb[0].mxu0 %v515
          %v583 = vpop.f32.mrb[0].mxu0
          %v584 = vadd.f32 0.0, %v583
          %v585 = vpop.f32.mrb[0].mxu0
          %586 = vdwg.mxu0
          %v588 = vsel %vm456, %v449, 0
          %590 = vmatprep.subr.mxu0 0.0
          %591 = vmatpush1.msra.mxu0 %v426
          %592 = vmatprep.subr.mxu0 0.0
          %593 = vmatpush1.msra.mxu0 %v427
          %594 = vmatprep.subr.mxu0 0.0
          %595 = vmatpush1.msra.mxu0 0.0
          %596 = vmatprep.subr.mxu0 0.0
          %597 = vmatpush1.msra.mxu0 0.0
          %598 = vmatprep.subr.mxu0 0.0
          %599 = vmatpush1.msra.mxu0 0.0
          %600 = vmatprep.subr.mxu0 0.0
          %601 = vmatpush1.msra.mxu0 0.0
          %602 = vmatprep.subr.mxu0 0.0
          %603 = vmatpush1.msra.mxu0 0.0
          %604 = vmatprep.subr.mxu0 0.0
          %605 = vmatpush1.msra.mxu0 0.0
          %606 = vmatprep.subr.mxu0 0.0
          %607 = vmatpush1.msra.mxu0 0.0
          %608 = vmatprep.subr.mxu0 0.0
          %609 = vmatpush1.msra.mxu0 0.0
          %610 = vmatprep.subr.mxu0 0.0
          %611 = vmatpush1.msra.mxu0 0.0
          %612 = vmatprep.subr.mxu0 0.0
          %613 = vmatpush1.msra.mxu0 0.0
          %614 = vmatprep.subr.mxu0 0.0
          %615 = vmatpush1.msra.mxu0 0.0
          %616 = vmatprep.subr.mxu0 0.0
          %617 = vmatpush1.msra.mxu0 0.0
          %618 = vmatprep.subr.mxu0 0.0
          %619 = vmatpush1.msra.mxu0 0.0
          %620 = vmatprep.subr.mxu0 0.0
          %621 = vmatpush1.msra.mxu0 0.0
          %622 = vmatprep.subr.mxu0 0.0
          %623 = vmatpush1.msra.mxu0 0.0
          %624 = vmatprep.subr.mxu0 0.0
          %625 = vmatpush1.msra.mxu0 0.0
          %626 = vmatprep.subr.mxu0 0.0
          %627 = vmatpush1.msra.mxu0 0.0
          %628 = vmatprep.subr.mxu0 0.0
          %629 = vmatpush1.msra.mxu0 0.0
          %630 = vmatprep.subr.mxu0 0.0
          %631 = vmatpush1.msra.mxu0 0.0
          %632 = vmatprep.subr.mxu0 0.0
          %633 = vmatpush1.msra.mxu0 0.0
          %634 = vmatprep.subr.mxu0 0.0
          %635 = vmatpush1.msra.mxu0 0.0
          %636 = vmatprep.subr.mxu0 0.0
          %637 = vmatpush1.msra.mxu0 0.0
          %638 = vmatprep.subr.mxu0 0.0
          %639 = vmatpush1.msra.mxu0 0.0
          %640 = vmatprep.subr.mxu0 0.0
          %641 = vmatpush1.msra.mxu0 0.0
          %642 = vmatprep.subr.mxu0 0.0
          %643 = vmatpush1.msra.mxu0 0.0
          %644 = vmatprep.subr.mxu0 0.0
          %645 = vmatpush1.msra.mxu0 0.0
          %646 = vmatprep.subr.mxu0 0.0
          %647 = vmatpush1.msra.mxu0 0.0
          %648 = vmatprep.subr.mxu0 0.0
          %649 = vmatpush1.msra.mxu0 0.0
          %650 = vmatprep.subr.mxu0 0.0
          %651 = vmatpush1.msra.mxu0 0.0
          %652 = vmatprep.subr.mxu0 0.0
          %653 = vmatpush1.msra.mxu0 0.0
          %654 = vmatprep.mubr.f32.mxu0 0.0
          %655 = vmatmul.mubr.f32.gmra.mrb[0].mxu0 %v588
          %v656 = vpop.f32.mrb[0].mxu0
          %v657 = vadd.f32 0.0, %v656
          %v658 = vpop.f32.mrb[0].mxu0
          %659 = vdwg.mxu0
          %v661 = vsel %vm456, %v450, 0
          %663 = vmatprep.subr.mxu0 0.0
          %664 = vmatpush1.msra.mxu0 %v428
          %665 = vmatprep.subr.mxu0 0.0
          %666 = vmatpush1.msra.mxu0 %v429
          %667 = vmatprep.subr.mxu0 0.0
          %668 = vmatpush1.msra.mxu0 0.0
          %669 = vmatprep.subr.mxu0 0.0
          %670 = vmatpush1.msra.mxu0 0.0
          %671 = vmatprep.subr.mxu0 0.0
          %672 = vmatpush1.msra.mxu0 0.0
          %673 = vmatprep.subr.mxu0 0.0
          %674 = vmatpush1.msra.mxu0 0.0
          %675 = vmatprep.subr.mxu0 0.0
          %676 = vmatpush1.msra.mxu0 0.0
          %677 = vmatprep.subr.mxu0 0.0
          %678 = vmatpush1.msra.mxu0 0.0
          %679 = vmatprep.subr.mxu0 0.0
          %680 = vmatpush1.msra.mxu0 0.0
          %681 = vmatprep.subr.mxu0 0.0
          %682 = vmatpush1.msra.mxu0 0.0
          %683 = vmatprep.subr.mxu0 0.0
          %684 = vmatpush1.msra.mxu0 0.0
          %685 = vmatprep.subr.mxu0 0.0
          %686 = vmatpush1.msra.mxu0 0.0
          %687 = vmatprep.subr.mxu0 0.0
          %688 = vmatpush1.msra.mxu0 0.0
          %689 = vmatprep.subr.mxu0 0.0
          %690 = vmatpush1.msra.mxu0 0.0
          %691 = vmatprep.subr.mxu0 0.0
          %692 = vmatpush1.msra.mxu0 0.0
          %693 = vmatprep.subr.mxu0 0.0
          %694 = vmatpush1.msra.mxu0 0.0
          %695 = vmatprep.subr.mxu0 0.0
          %696 = vmatpush1.msra.mxu0 0.0
          %697 = vmatprep.subr.mxu0 0.0
          %698 = vmatpush1.msra.mxu0 0.0
          %699 = vmatprep.subr.mxu0 0.0
          %700 = vmatpush1.msra.mxu0 0.0
          %701 = vmatprep.subr.mxu0 0.0
          %702 = vmatpush1.msra.mxu0 0.0
          %703 = vmatprep.subr.mxu0 0.0
          %704 = vmatpush1.msra.mxu0 0.0
          %705 = vmatprep.subr.mxu0 0.0
          %706 = vmatpush1.msra.mxu0 0.0
          %707 = vmatprep.subr.mxu0 0.0
          %708 = vmatpush1.msra.mxu0 0.0
          %709 = vmatprep.subr.mxu0 0.0
          %710 = vmatpush1.msra.mxu0 0.0
          %711 = vmatprep.subr.mxu0 0.0
          %712 = vmatpush1.msra.mxu0 0.0
          %713 = vmatprep.subr.mxu0 0.0
          %714 = vmatpush1.msra.mxu0 0.0
          %715 = vmatprep.subr.mxu0 0.0
          %716 = vmatpush1.msra.mxu0 0.0
          %717 = vmatprep.subr.mxu0 0.0
          %718 = vmatpush1.msra.mxu0 0.0
          %719 = vmatprep.subr.mxu0 0.0
          %720 = vmatpush1.msra.mxu0 0.0
          %721 = vmatprep.subr.mxu0 0.0
          %722 = vmatpush1.msra.mxu0 0.0
          %723 = vmatprep.subr.mxu0 0.0
          %724 = vmatpush1.msra.mxu0 0.0
          %725 = vmatprep.subr.mxu0 0.0
          %726 = vmatpush1.msra.mxu0 0.0
          %727 = vmatprep.mubr.f32.mxu0 0.0
          %728 = vmatmul.mubr.f32.gmra.mrb[0].mxu0 %v661
          %v729 = vpop.f32.mrb[0].mxu0
          %v730 = vadd.f32 0.0, %v729
          %v731 = vpop.f32.mrb[0].mxu0
          %732 = vdwg.mxu0
          %v734 = vsel %vm456, %v451, 0
          %736 = vmatprep.subr.mxu0 0.0
          %737 = vmatpush1.msra.mxu0 %v430
          %738 = vmatprep.subr.mxu0 0.0
          %739 = vmatpush1.msra.mxu0 %v431
          %740 = vmatprep.subr.mxu0 0.0
          %741 = vmatpush1.msra.mxu0 0.0
          %742 = vmatprep.subr.mxu0 0.0
          %743 = vmatpush1.msra.mxu0 0.0
          %744 = vmatprep.subr.mxu0 0.0
          %745 = vmatpush1.msra.mxu0 0.0
          %746 = vmatprep.subr.mxu0 0.0
          %747 = vmatpush1.msra.mxu0 0.0
          %748 = vmatprep.subr.mxu0 0.0
          %749 = vmatpush1.msra.mxu0 0.0
          %750 = vmatprep.subr.mxu0 0.0
          %751 = vmatpush1.msra.mxu0 0.0
          %752 = vmatprep.subr.mxu0 0.0
          %753 = vmatpush1.msra.mxu0 0.0
          %754 = vmatprep.subr.mxu0 0.0
          %755 = vmatpush1.msra.mxu0 0.0
          %756 = vmatprep.subr.mxu0 0.0
          %757 = vmatpush1.msra.mxu0 0.0
          %758 = vmatprep.subr.mxu0 0.0
          %759 = vmatpush1.msra.mxu0 0.0
          %760 = vmatprep.subr.mxu0 0.0
          %761 = vmatpush1.msra.mxu0 0.0
          %762 = vmatprep.subr.mxu0 0.0
          %763 = vmatpush1.msra.mxu0 0.0
          %764 = vmatprep.subr.mxu0 0.0
          %765 = vmatpush1.msra.mxu0 0.0
          %766 = vmatprep.subr.mxu0 0.0
          %767 = vmatpush1.msra.mxu0 0.0
          %768 = vmatprep.subr.mxu0 0.0
          %769 = vmatpush1.msra.mxu0 0.0
          %770 = vmatprep.subr.mxu0 0.0
          %771 = vmatpush1.msra.mxu0 0.0
          %772 = vmatprep.subr.mxu0 0.0
          %773 = vmatpush1.msra.mxu0 0.0
          %774 = vmatprep.subr.mxu0 0.0
          %775 = vmatpush1.msra.mxu0 0.0
          %776 = vmatprep.subr.mxu0 0.0
          %777 = vmatpush1.msra.mxu0 0.0
          %778 = vmatprep.subr.mxu0 0.0
          %779 = vmatpush1.msra.mxu0 0.0
          %780 = vmatprep.subr.mxu0 0.0
          %781 = vmatpush1.msra.mxu0 0.0
          %782 = vmatprep.subr.mxu0 0.0
          %783 = vmatpush1.msra.mxu0 0.0
          %784 = vmatprep.subr.mxu0 0.0
          %785 = vmatpush1.msra.mxu0 0.0
          %786 = vmatprep.subr.mxu0 0.0
          %787 = vmatpush1.msra.mxu0 0.0
          %788 = vmatprep.subr.mxu0 0.0
          %789 = vmatpush1.msra.mxu0 0.0
          %790 = vmatprep.subr.mxu0 0.0
          %791 = vmatpush1.msra.mxu0 0.0
          %792 = vmatprep.subr.mxu0 0.0
          %793 = vmatpush1.msra.mxu0 0.0
          %794 = vmatprep.subr.mxu0 0.0
          %795 = vmatpush1.msra.mxu0 0.0
          %796 = vmatprep.subr.mxu0 0.0
          %797 = vmatpush1.msra.mxu0 0.0
          %798 = vmatprep.subr.mxu0 0.0
          %799 = vmatpush1.msra.mxu0 0.0
          %800 = vmatprep.mubr.f32.mxu0 0.0
          %801 = vmatmul.mubr.f32.gmra.mrb[0].mxu0 %v734
          %v802 = vpop.f32.mrb[0].mxu0
          %v803 = vadd.f32 0.0, %v802
          %v804 = vpop.f32.mrb[0].mxu0
          %805 = vdwg.mxu0
          %vm806 = vcmp.eq.s32.totalorder %v438, %v399
          %v807 = vsel %vm806, %v584, 0.0
          %v808 = vsel %vm806, %v657, 0.0
          %v809 = vsel %vm806, %v730, 0.0
          %v810 = vsel %vm806, %v803, 0.0
          %v811 = vsel %vm489, %v807, 0.0
          %v812 = vsel %vm489, %v808, 0.0
          %v813 = vadd.f32 %v811, %v812
          %v814 = vsel %vm489, %v809, 0.0
          %v815 = vadd.f32 %v813, %v814
          %v816 = vsel %vm489, %v810, 0.0
          %v817 = vadd.f32 %v815, %v816
          %818 = vadd.xlane.f32.xlu0 %v817
          %v819 = vpop.xlane.xlu0 %818
          %v820 = vrot.slane %v819, 4
          %v821 = vadd.f32 %v819, %v820
          %v822 = vrot.slane %v821, 2
          %v823 = vadd.f32 %v821, %v822
          %v824 = vrot.slane %v823, 1
          %v825 = vadd.f32 %v823, %v824
          %s826 = vtos %v825
          %s827 = smin.f32 %s397, 16.0
          %s828 = smul.f32 %s827, 32.0
          %s829 = sadd.f32 %s472, %s513
          %s830 = smul.f32 %s826, 2.0
          %s831 = ssub.f32 %s829, %s830
          %v832 = vstv %s828
          %v833 = vrcp.pop %v832
          %s834 = vtos %v833
          %s835 = smul.f32 %s831, %s834
          %vm836 = vcmp.eq.s32.totalorder %v399, 1
          %v837 = vstv %s419
          %v838 = vsel %vm836, %v837, 0.0
          %vm839 = vcmp.eq.s32.totalorder %v399, 2
          %v840 = vstv %s835
          %v841 = vsel %vm839, %v840, 0.0
          %v842 = vadd.f32 %v838, %v841
          %843 = vst [vmem:[%s360] sm:$0x1] %v842
        $region48: #{tpu_custom_call.1} parent=43 // pred_fallthru
          _
        // Predicated region
        $region49: #{tpu_custom_call.1} parent=43 // pred_check
          %p844 = pneg %p401
        $region50: #{tpu_custom_call.1} parent=43 // pred_check_branch
          %846 = sbr.rel (%p844) target = $region52
        $region51: #{tpu_custom_call.1} parent=43 // pred_region
          %vm847 = vcmask 7168
          %848 = vst.msk [vmem:[#allocation2] sm:$0xff] %vm847, -inf
          %849 = vst.msk [vmem:[#allocation3] sm:$0xff] %vm847, 0.0
          %850 = vst.msk [vmem:[#allocation4] sm:$0xff] %vm847, 0.0
        $region52: #{tpu_custom_call.1} parent=43 // pred_fallthru
          _
        %v851 = vld [vmem:[%s370] sm:$0xff]
        %v852 = vld [vmem:[%s377] sm:$0xff]
        %s853 = smul.u32 %s34, 32
        %v854 = vstv %s853
        %v855 = vadd.s32 %v399, %v854
        %v856 = vld [vmem:[#allocation2] sm:$0xff]
        %vm857 = vcmask 261120
        %v858 = vsel %vm857, %v851, -inf
        %859 = vmax.xlane.f32.xlu0 %v858
        %v860 = vpop.xlane.xlu0 %859
        %v861 = vmax.f32 %v856, %v860
        %863 = vset.pattern.permute.xlu0 0
        %864 = vperm.xlu0 %863, %v861
        %v865 = vpop.permute.xlu0 %864
        %v867 = vsub.f32 %v851, %v865
        %v868 = vmul.f32 %v867, 1.442695
        %v869 = vpow.pop %v868
        %v870 = vld [vmem:[#allocation3] sm:$0xff]
        %v871 = vsub.f32 %v856, %v861
        %v872 = vmul.f32 %v871, 1.442695
        %v873 = vpow.pop %v872
        %v874 = vmul.f32 %v870, %v873
        %v875 = vsel %vm857, %v869, 0.0
        %876 = vadd.xlane.f32.xlu0 %v875
        %v877 = vpop.xlane.xlu0 %876
        %v878 = vadd.f32 %v874, %v877
        %vm879 = vcmask 7168
        %880 = vst.msk [vmem:[#allocation3] sm:$0xff] %vm879, %v878
        %881 = vst.msk [vmem:[#allocation2] sm:$0xff] %vm879, %v861
        %v882 = vld [vmem:[#allocation4] sm:$0xff]
        %883 = vset.pattern.permute.xlu0 0
        %884 = vperm.xlu0 %883, %v852
        %v885 = vpop.permute.xlu0 %884
        %vm886 = vcmp.eq.s32.totalorder %v855, %v885
        %v887 = vsel %vm886, %v851, 0.0
        %v888 = vsel %vm857, %v887, 0.0
        %889 = vadd.xlane.f32.xlu0 %v888
        %v890 = vpop.xlane.xlu0 %889
        %v891 = vadd.f32 %v882, %v890
        %892 = vst.msk [vmem:[#allocation4] sm:$0xff] %vm879, %v891
        // Predicated region
        $region53: #{tpu_custom_call.1} parent=43 // pred_check
          %p893 = pneg %p401
        $region54: #{tpu_custom_call.1} parent=43 // pred_check_branch
          %895 = sbr.rel (%p893) target = $region56
        $region55: #{tpu_custom_call.1} parent=43 // pred_region
          %v896 = vld [vmem:[#allocation2] sm:$0xff]
          %v897 = vld [vmem:[#allocation3] sm:$0xff]
          %v898 = vlog2.pop %v897
          %v899 = vmul.f32 %v898, 0.6931472
          %v900 = vadd.f32 %v896, %v899
          %v901 = vld [vmem:[#allocation4] sm:$0xff]
          %v902 = vsub.f32 %v900, %v901
          %vm903 = vcmp.eq.s32.totalorder %v852, 515
          %v904 = vsel %vm903, 0.0, %v902
          %v905 = vld [vmem:[%s360] sm:$0x1]
          %vm906 = vcmp.eq.s32.totalorder %v399, 0
          %v907 = vsel %vm879, %v904, 0.0
          %908 = vadd.xlane.f32.xlu0 %v907
          %v909 = vpop.xlane.xlu0 %908
          %v910 = vrot.slane %v909, 4
          %v911 = vadd.f32 %v909, %v910
          %v912 = vrot.slane %v911, 2
          %v913 = vadd.f32 %v911, %v912
          %v914 = vrot.slane %v913, 1
          %v915 = vadd.f32 %v913, %v914
          %s916 = vtos %v915
          %v917 = vstv %s916
          %v918 = vsel %vm906, %v917, 0.0
          %v919 = vadd.f32 %v905, %v918
          %920 = vst [vmem:[%s360] sm:$0x1] %v919
        $region56: #{tpu_custom_call.1} parent=43 // pred_fallthru
          _
        // Predicated region
        $region57: #{tpu_custom_call.1} parent=43 // pred_check
          _
        $region58: #{tpu_custom_call.1} parent=43 // pred_check_branch
          %922 = sbr.rel (%p402) target = $region60
        $region59: #{tpu_custom_call.1} parent=43 // pred_region
          %v923 = vld [vmem:[%s360] sm:$0x1]
          %vm924 = vcmp.eq.s32.totalorder %v399, 0
          %v925 = vstv %s397
          %v926 = vrcp.pop %v925
          %s927 = vtos %v926
          %v928 = vstv %s927
          %v929 = vsel %vm924, %v928, 1.0
          %v930 = vmul.f32 %v923, %v929
          %931 = vst [vmem:[%s360] sm:$0x1] %v930
        $region60: #{tpu_custom_call.1} parent=43 // pred_fallthru
          _
        %s932 = sand.u32 %s216, 1
        %s933 = scalar_lea.sflag [#allocation8], %s932
        %s934 = sand.u32 %s216, 1
        %s935 = scalar_lea.vmem [#allocation7], %s934
        // Predicated region
        $region61: #{tpu_custom_call.1} parent=43 // pred_check
          %p936 = pneg %p226
        $region62: #{tpu_custom_call.1} parent=43 // pred_check_branch
          %938 = sbr.rel (%p936) target = $region64
        $region63: #{tpu_custom_call.1} parent=43 // pred_region
          %s940 = ssub.s32 16, 16
          %941 = vsyncadd %s933, %s940
          %s942 = smul.addr %s32, 16
          %s943 = scalar_lea.hbm %s7, %s942
          %s945 = sshll.u32 %s935, 4
          %s946 = int_to_ptr.vmem [resolvable:$true] %s945
          %948 = dma.vmem_to_hbm [thread:$0]  %s946, 16, %s943, %s933
        $region64: #{tpu_custom_call.1} parent=43 // pred_fallthru
          _
      $region44: #{tpu_custom_call.1} parent=5 // pred_fallthru
        _
      %p949 = scmp.le.s32.totalorder 2, %s22
      // Predicated region
      $region65: #{tpu_custom_call.1} parent=5 // pred_check
        %p950 = pneg %p949
      $region66: #{tpu_custom_call.1} parent=5 // pred_check_branch
        %952 = sbr.rel (%p950) target = $region68
      $region67: #{tpu_custom_call.1} parent=5 // pred_region
        %s953 = ssub.s32 %s22, 2
        // Predicated region
        $region69: #{tpu_custom_call.1} parent=67 // pred_check
          %p954 = pneg %p232
        $region70: #{tpu_custom_call.1} parent=67 // pred_check_branch
          %956 = sbr.rel (%p954) target = $region72
        $region71: #{tpu_custom_call.1} parent=67 // pred_region
          %s957 = sand.u32 %s217, 1
          %s958 = scalar_lea.sflag [#allocation8], %s957
          %s959 = sand.u32 %s217, 1
          %s960 = scalar_lea.vmem [#allocation7], %s959
          %961 = dma.done %s958, 16
        $region72: #{tpu_custom_call.1} parent=67 // pred_fallthru
          _
      $region68: #{tpu_custom_call.1} parent=5 // pred_fallthru
        _
    $region6: #{tpu_custom_call.1} parent=1 // loop_footer
      %s26 = sadd.s32 1, %s22
    $region7: #{tpu_custom_call.1} parent=1 // loop_footer_branch
      %21 = sbr.rel target = $region3
    $region8: #{tpu_custom_call.1} parent=1 // loop_exit
      _
    %962 = vsyncpa [#allocation8], 1
    %s963 = scalar_lea.sflag [#allocation8], 1
    %964 = vsyncpa %s963, 1

</llo_original>
